<compile_context>
chip_gen: v7x
topology: tpu7x:2x2x1
jax: 0.10.0
libtpu: 0.0.40
codegen_flags: <defaults>
</compile_context>

<pallas_src>
import functools

import jax
import jax.numpy as jnp
from jax.experimental import pallas as pl
from jax.experimental.pallas import tpu as pltpu


def linear_kernel(x_ref, w_ref, b_ref, o_ref):
    # x_ref: (tm, IN), w_ref: (IN, OUT) pre-packed lane-major, b_ref: (1, OUT),
    # o_ref: (tm, OUT).  Single MXU pass (K is a full-extent block), bias fused
    # into the same store -- no scratch, no separate finalize pass.
    o_ref[...] = (
        jnp.dot(x_ref[...], w_ref[...], preferred_element_type=jnp.float32)
        + b_ref[...]
    ).astype(o_ref.dtype)


def pack_linear_params(weight, bias):
    """One-time (model-init) packing of torch.nn.Linear parameters.

    weight: (OUT, IN) -> (IN, OUT) so the kernel contracts x's last dim with
    w's first dim (no in-kernel transpose / XLU relayout); bias -> (1, OUT).
    """
    w_packed = jnp.asarray(weight).T
    b_packed = jnp.asarray(bias).reshape(1, -1)
    return w_packed, b_packed


@functools.partial(jax.jit, static_argnames=("tm",))
def pallas_linear(x, w_packed, b_packed, *, tm=256):
    """y = x @ W^T + b with pre-packed params (w_packed=(IN,OUT), b=(1,OUT))."""
    B, IN = x.shape
    OUT = w_packed.shape[1]

    # Batch tile: clamp to B; fall back to a full-extent M block when B does
    # not divide evenly (a full-extent block always satisfies the (8,128)
    # rule).  For the toy B=8 case this is a single (8, 3) block, grid=(1,).
    tm = min(tm, B)
    if B % tm != 0:
        tm = B
    grid = (B // tm,)

    itemsize = x.dtype.itemsize
    cost = pl.CostEstimate(
        flops=2 * B * IN * OUT,
        transcendentals=0,
        bytes_accessed=itemsize * (B * IN + IN * OUT + OUT + B * OUT),
    )

    return pl.pallas_call(
        linear_kernel,
        out_shape=jax.ShapeDtypeStruct((B, OUT), x.dtype),
        grid_spec=pltpu.PrefetchScalarGridSpec(
            num_scalar_prefetch=0,
            grid=grid,
            in_specs=[
                pl.BlockSpec((tm, IN), lambda i: (i, 0)),    # full-extent K block
                pl.BlockSpec((IN, OUT), lambda i: (0, 0)),   # whole packed weight
                pl.BlockSpec((1, OUT), lambda i: (0, 0)),    # bias row
            ],
            out_specs=pl.BlockSpec((tm, OUT), lambda i: (i, 0)),  # full-extent N
        ),
        compiler_params=pltpu.CompilerParams(
            dimension_semantics=("parallel",),
        ),
        cost_estimate=cost,
    )(x, w_packed, b_packed)


if __name__ == "__main__":
    key = jax.random.PRNGKey(0)
    kx, kw, kb = jax.random.split(key, 3)

    IN_FEATURES = 3
    OUT_FEATURES = 1
    BATCH = 8

    # Deterministic init (PyTorch Linear uses U(-1/sqrt(fan_in), 1/sqrt(fan_in))).
    bound = 1.0 / (IN_FEATURES ** 0.5)
    weight = jax.random.uniform(
        kw, (OUT_FEATURES, IN_FEATURES), minval=-bound, maxval=bound,
        dtype=jnp.float32,
    )
    bias = jax.random.uniform(
        kb, (OUT_FEATURES,), minval=-bound, maxval=bound, dtype=jnp.float32
    )
    x = jax.random.normal(kx, (BATCH, IN_FEATURES), dtype=jnp.float32)

    # Pack parameters ONCE at init time -- not in the per-call hot path.
    w_packed, b_packed = pack_linear_params(weight, bias)

    y = pallas_linear(x, w_packed, b_packed)
    jax.block_until_ready(y)

    # Reference check against plain XLA.
    y_ref = x @ weight.T + bias
    assert y.shape == (BATCH, OUT_FEATURES)
    assert jnp.allclose(y, y_ref, atol=1e-5, rtol=1e-5)

    print("KERNEL_OK")
</pallas_src>

<mosaic_0001>
module attributes {stable_mosaic.version = 11 : i64} {
  func.func @linear_kernel(%arg0: i32, %arg1: memref<8x3xf32, #tpu.memory_space<vmem>>, %arg2: memref<3x1xf32, #tpu.memory_space<vmem>>, %arg3: memref<1x1xf32, #tpu.memory_space<vmem>>, %arg4: memref<8x1xf32, #tpu.memory_space<vmem>>) attributes {dimension_semantics = [#tpu.dimension_semantics<parallel>], iteration_bounds = array<i64: 1>, scalar_prefetch = 0 : i64, scratch_operands = 0 : i64, tpu.core_type = #tpu.core_type<tc>, window_params = [{transform_indices = @transform_0, window_bounds = array<i64: 8, 3>}, {pipeline_mode = #tpu.pipeline_mode<synchronous>, transform_indices = @transform_1, window_bounds = array<i64: 3, 1>}, {pipeline_mode = #tpu.pipeline_mode<synchronous>, transform_indices = @transform_2, window_bounds = array<i64: 1, 1>}, {transform_indices = @transform_3, window_bounds = array<i64: 8, 1>}]} {
    %c0 = arith.constant 0 : index
    %c0_0 = arith.constant 0 : index
    %0 = vector.load %arg1[%c0, %c0_0] : memref<8x3xf32, #tpu.memory_space<vmem>>, vector<8x3xf32>
    %c0_1 = arith.constant 0 : index
    %c0_2 = arith.constant 0 : index
    %1 = vector.load %arg2[%c0_1, %c0_2] : memref<3x1xf32, #tpu.memory_space<vmem>>, vector<3x1xf32>
    %cst = arith.constant dense<0.000000e+00> : vector<8x1xf32>
    %2 = tpu.matmul %0, %1, %cst {dimension_numbers = #tpu.dot_dimension_numbers<[1], [0], [0], [1], [0, 0, 1, 1], [], []>} : vector<8x3xf32>, vector<3x1xf32>, vector<8x1xf32> -> vector<8x1xf32>
    %c0_3 = arith.constant 0 : index
    %c0_4 = arith.constant 0 : index
    %3 = vector.load %arg3[%c0_3, %c0_4] : memref<1x1xf32, #tpu.memory_space<vmem>>, vector<1x1xf32>
    %4 = vector.broadcast %3 : vector<1x1xf32> to vector<8x1xf32>
    %5 = arith.addf %2, %4 : vector<8x1xf32>
    %c0_5 = arith.constant 0 : index
    %c0_6 = arith.constant 0 : index
    %6 = vector.load %arg4[%c0_5, %c0_6] : memref<8x1xf32, #tpu.memory_space<vmem>>, vector<8x1xf32>
    tpu.vector_store %arg4[%c0_5, %c0_6], %5 {strides = array<i32>} : memref<8x1xf32, #tpu.memory_space<vmem>>, vector<8x1xf32>,
    return
  }
  func.func @transform_0(%arg0: i32) -> (i32, i32) {
    %c0_i32 = arith.constant 0 : i32
    %c0_i32_0 = arith.constant 0 : i32
    return %arg0, %c0_i32 : i32, i32
  }
  func.func @transform_1(%arg0: i32) -> (i32, i32) {
    %c0_i32 = arith.constant 0 : i32
    %c0_i32_0 = arith.constant 0 : i32
    %c0_i32_1 = arith.constant 0 : i32
    return %c0_i32, %c0_i32_0 : i32, i32
  }
  func.func @transform_2(%arg0: i32) -> (i32, i32) {
    %c0_i32 = arith.constant 0 : i32
    %c0_i32_0 = arith.constant 0 : i32
    %c0_i32_1 = arith.constant 0 : i32
    return %c0_i32, %c0_i32_0 : i32, i32
  }
  func.func @transform_3(%arg0: i32) -> (i32, i32) {
    %c0_i32 = arith.constant 0 : i32
    %c0_i32_0 = arith.constant 0 : i32
    return %arg0, %c0_i32 : i32, i32
  }
}

</mosaic_0001>

<llo_original>
// kernel: pallas_linear.1
$region0: #{pallas_linear.1}
  #allocation0 [shape = 'u32[]', space=smem, size = 0x4, offset = 0x4, fixed_abs, tag = 'smem constant byte address 0x4 - core index']
  #allocation1 [shape = 'u32[144,128]{1,0:T(1,128)}', space=vmem, size = 0x12000, scoped, tag = 'internal scratch']
  #allocation2 [shape = 'f32[1,1]{1,0:T(1,128)S(1)}', space=vmem, size = 0x200, scoped, tag = 'scoped memory for pallas_linear.1']
  %s0 = inlined_call_operand.vmem [shape: f32[8,3], index: 0, kind: input, shape index: {}]
  %s1 = inlined_call_operand.vmem [shape: f32[3,1], index: 1, kind: input, shape index: {}]
  %s2 = inlined_call_operand.<no memory space> [shape: f32[1,1], index: 2, kind: input, shape index: {}]
  %s3 = inlined_call_operand.vmem [shape: f32[8,1], index: 3, kind: output, shape index: {}]
  %s4 = sld [smem:[#allocation0]]
  $region22: #{pallas_linear.1} parent=0
    _
  %s6 = ssub.s32 1, %s4
  %s7 = scalar_select 0, %s6, %s4
  %v8 = vstv %s2
  %9 = vst [vmem:[#allocation2] sm:$0x1] %v8
  // Predicated region
  $region2: #{pallas_linear.1} parent=0 // pred_check
    _
  $region3: #{pallas_linear.1} parent=0 // pred_check_branch
    %11 = sbr.rel (0) target = $region5
  $region4: #{pallas_linear.1} parent=0 // pred_region
    _
  $region5: #{pallas_linear.1} parent=0 // pred_fallthru
    _
  // Predicated region
  $region6: #{pallas_linear.1} parent=0 // pred_check
    _
  $region7: #{pallas_linear.1} parent=0 // pred_check_branch
    %13 = sbr.rel (0) target = $region9
  $region8: #{pallas_linear.1} parent=0 // pred_region
    _
  $region9: #{pallas_linear.1} parent=0 // pred_fallthru
    _
  // Predicated region
  $region10: #{pallas_linear.1} parent=0 // pred_check
    _
  $region11: #{pallas_linear.1} parent=0 // pred_check_branch
    %15 = sbr.rel (0) target = $region13
  $region12: #{pallas_linear.1} parent=0 // pred_region
    _
  $region13: #{pallas_linear.1} parent=0 // pred_fallthru
    _
  %v16 = vld [vmem:[%s0] sm:$0xff]
  %v17 = vld [vmem:[%s1] sm:$0x7]
  %v18 = vld [vmem:[#allocation2] sm:$0x1]
  %v20 = vlaneseq
  %v21 = vshrl.u32 %v20, 7
  %v22 = vsub.s32 0, %v21
  %v23 = vrot.slane %v18, %v22
  %vm25 = vcmask 23552
  %v27 = vsel %vm25, %v16, 0
  %vm29 = vcmask 1042432
  %v31 = vsel %vm29, %v17, 0
  %33 = vmatprep.subr.mxu0 0.0
  %34 = vmatpush1.msra.mxu0 %v31
  %35 = vmatprep.subr.mxu0 0.0
  %36 = vmatpush1.msra.mxu0 0.0
  %37 = vmatprep.subr.mxu0 0.0
  %38 = vmatpush1.msra.mxu0 0.0
  %39 = vmatprep.subr.mxu0 0.0
  %40 = vmatpush1.msra.mxu0 0.0
  %41 = vmatprep.subr.mxu0 0.0
  %42 = vmatpush1.msra.mxu0 0.0
  %43 = vmatprep.subr.mxu0 0.0
  %44 = vmatpush1.msra.mxu0 0.0
  %45 = vmatprep.subr.mxu0 0.0
  %46 = vmatpush1.msra.mxu0 0.0
  %47 = vmatprep.subr.mxu0 0.0
  %48 = vmatpush1.msra.mxu0 0.0
  %49 = vmatprep.subr.mxu0 0.0
  %50 = vmatpush1.msra.mxu0 0.0
  %51 = vmatprep.subr.mxu0 0.0
  %52 = vmatpush1.msra.mxu0 0.0
  %53 = vmatprep.subr.mxu0 0.0
  %54 = vmatpush1.msra.mxu0 0.0
  %55 = vmatprep.subr.mxu0 0.0
  %56 = vmatpush1.msra.mxu0 0.0
  %57 = vmatprep.subr.mxu0 0.0
  %58 = vmatpush1.msra.mxu0 0.0
  %59 = vmatprep.subr.mxu0 0.0
  %60 = vmatpush1.msra.mxu0 0.0
  %61 = vmatprep.subr.mxu0 0.0
  %62 = vmatpush1.msra.mxu0 0.0
  %63 = vmatprep.subr.mxu0 0.0
  %64 = vmatpush1.msra.mxu0 0.0
  %65 = vmatprep.subr.mxu0 0.0
  %66 = vmatpush1.msra.mxu0 0.0
  %67 = vmatprep.subr.mxu0 0.0
  %68 = vmatpush1.msra.mxu0 0.0
  %69 = vmatprep.subr.mxu0 0.0
  %70 = vmatpush1.msra.mxu0 0.0
  %71 = vmatprep.subr.mxu0 0.0
  %72 = vmatpush1.msra.mxu0 0.0
  %73 = vmatprep.subr.mxu0 0.0
  %74 = vmatpush1.msra.mxu0 0.0
  %75 = vmatprep.subr.mxu0 0.0
  %76 = vmatpush1.msra.mxu0 0.0
  %77 = vmatprep.subr.mxu0 0.0
  %78 = vmatpush1.msra.mxu0 0.0
  %79 = vmatprep.subr.mxu0 0.0
  %80 = vmatpush1.msra.mxu0 0.0
  %81 = vmatprep.subr.mxu0 0.0
  %82 = vmatpush1.msra.mxu0 0.0
  %83 = vmatprep.subr.mxu0 0.0
  %84 = vmatpush1.msra.mxu0 0.0
  %85 = vmatprep.subr.mxu0 0.0
  %86 = vmatpush1.msra.mxu0 0.0
  %87 = vmatprep.subr.mxu0 0.0
  %88 = vmatpush1.msra.mxu0 0.0
  %89 = vmatprep.subr.mxu0 0.0
  %90 = vmatpush1.msra.mxu0 0.0
  %91 = vmatprep.subr.mxu0 0.0
  %92 = vmatpush1.msra.mxu0 0.0
  %93 = vmatprep.subr.mxu0 0.0
  %94 = vmatpush1.msra.mxu0 0.0
  %95 = vmatprep.subr.mxu0 0.0
  %96 = vmatpush1.msra.mxu0 0.0
  %97 = vmatprep.mubr.f32.mxu0 0.0
  %98 = vmatmul.mubr.f32.gmra.mrb[0].mxu0 %v27
  %v99 = vpop.f32.mrb[0].mxu0
  %v100 = vadd.f32 %v23, %v99
  %v101 = vpop.f32.mrb[0].mxu0
  %102 = vdwg.mxu0
  %vm103 = vcmask 7168
  %104 = vst.msk [vmem:[%s3] sm:$0xff] %vm103, %v100
  // Predicated region
  $region14: #{pallas_linear.1} parent=0 // pred_check
    _
  $region15: #{pallas_linear.1} parent=0 // pred_check_branch
    %106 = sbr.rel (0) target = $region17
  $region16: #{pallas_linear.1} parent=0 // pred_region
    _
  $region17: #{pallas_linear.1} parent=0 // pred_fallthru
    _
  // Predicated region
  $region18: #{pallas_linear.1} parent=0 // pred_check
    _
  $region19: #{pallas_linear.1} parent=0 // pred_check_branch
    %108 = sbr.rel (0) target = $region21
  $region20: #{pallas_linear.1} parent=0 // pred_region
    _
  $region21: #{pallas_linear.1} parent=0 // pred_fallthru
    _

</llo_original>
